<compile_context>
chip_gen: v7x
topology: tpu7x:2x2x1
jax: 0.10.0
libtpu: 0.0.40
codegen_flags: <defaults>
</compile_context>

<pallas_src>
import jax
import jax.numpy as jnp
from jax.experimental import pallas as pl
from jax.experimental.pallas import tpu as pltpu


def _round_up(x, m):
    return (x + m - 1) // m * m


def _complex_linear_kernel(xy_ref, w_ref, b_ref, out_ref):
    # xy_ref : (2, TK)  K-chunk of [[x, -y], [y, x]]
    # w_ref  : (TK, TN) K/N-chunk of [Wr.T ; Wi.T]
    # b_ref  : (2, TN)  N-chunk of [br ; bi]
    # out_ref: (2, TN)  row 0 = real, row 1 = imag (resident across the K axis)
    k = pl.program_id(1)

    @pl.when(k == 0)
    def _init():
        out_ref[...] = jnp.zeros_like(out_ref)

    # One MXU matmul yields both real and imag rows for this (N, K) tile.
    out_ref[...] += jnp.dot(xy_ref[...], w_ref[...],
                            preferred_element_type=jnp.float32)

    @pl.when(k == pl.num_programs(1) - 1)
    def _finalize():
        out_ref[...] += b_ref[...]


def prepare_complex_linear_params(Wr, Wi, br, bi, *, tn=512, tk=1024):
    """One-time parameter packing (call at init, NOT per forward pass).

    Returns the pre-transposed, pre-stacked, zero-padded weight slab
    [Wr.T ; Wi.T] (kp, np), the stacked/padded bias (2, np), and the static
    tiling geometry.
    """
    assert tn % 128 == 0 and tk % 128 == 0
    out_f, in_f = Wr.shape
    k_dim = 2 * in_f

    kp = _round_up(k_dim, 128)
    tk = min(tk, kp)
    kp = _round_up(kp, tk)

    np_ = _round_up(out_f, 128)
    tn = min(tn, np_)
    np_ = _round_up(np_, tn)

    w_stack = jnp.concatenate(
        [Wr.T.astype(jnp.float32), Wi.T.astype(jnp.float32)], axis=0)  # (2*in, out)
    w_stack = jnp.pad(w_stack, ((0, kp - k_dim), (0, np_ - out_f)))

    b = jnp.stack([br, bi], axis=0).astype(jnp.float32)                # (2, out)
    b = jnp.pad(b, ((0, 0), (0, np_ - out_f)))

    geom = dict(in_f=in_f, out_f=out_f, kp=kp, np_=np_, tk=tk, tn=tn)
    return w_stack, b, geom


def complex_linear_apply(z, w_stack, b_stack, geom):
    """z: complex64 (in_features,). Returns complex64 (out_features,)."""
    in_f, out_f = geom["in_f"], geom["out_f"]
    kp, np_, tk, tn = geom["kp"], geom["np_"], geom["tk"], geom["tn"]

    x = jnp.real(z).astype(jnp.float32)
    y = jnp.imag(z).astype(jnp.float32)
    # Folded complex layout: row 0 = [x, -y], row 1 = [y, x]   -> (2, 2*in)
    xy = jnp.stack([jnp.concatenate([x, -y]), jnp.concatenate([y, x])], axis=0)
    xy = jnp.pad(xy, ((0, 0), (0, kp - 2 * in_f)))

    grid = (np_ // tn, kp // tk)  # (N tiles "parallel", K tiles "arbitrary")

    flops = 2 * 2 * kp * np_                              # (2,kp)@(kp,np)
    bytes_accessed = 4 * (kp * np_ + 2 * kp + 2 * np_ + 2 * np_)

    out = pl.pallas_call(
        _complex_linear_kernel,
        out_shape=jax.ShapeDtypeStruct((2, np_), jnp.float32),
        grid=grid,
        in_specs=[
            pl.BlockSpec((2, tk), lambda j, k: (0, k)),   # xy : K-streamed
            pl.BlockSpec((tk, tn), lambda j, k: (k, j)),  # W  : (K, N) tiles
            pl.BlockSpec((2, tn), lambda j, k: (0, j)),   # bias: per-N tile
        ],
        out_specs=pl.BlockSpec((2, tn), lambda j, k: (0, j)),
        compiler_params=pltpu.CompilerParams(
            dimension_semantics=("parallel", "arbitrary"),
            vmem_limit_bytes=32 * 1024 * 1024,
        ),
        cost_estimate=pl.CostEstimate(
            flops=flops, transcendentals=0, bytes_accessed=bytes_accessed),
    )(xy, w_stack, b_stack)

    real = out[0, :out_f]
    imag = out[1, :out_f]
    return jax.lax.complex(real, imag)


if __name__ == "__main__":
    # --- Case 1: shapes matching the module spec (small) -------------------
    in_features, out_features = 32, 48

    key = jax.random.PRNGKey(0)
    k_wr, k_wi, k_br, k_bi, k_x, k_y = jax.random.split(key, 6)

    Wr = jax.random.normal(k_wr, (out_features, in_features), dtype=jnp.float32)
    Wi = jax.random.normal(k_wi, (out_features, in_features), dtype=jnp.float32)
    br = jax.random.normal(k_br, (out_features,), dtype=jnp.float32)
    bi = jax.random.normal(k_bi, (out_features,), dtype=jnp.float32)

    x = jax.random.normal(k_x, (in_features,), dtype=jnp.float32)
    y = jax.random.normal(k_y, (in_features,), dtype=jnp.float32)
    z = jax.lax.complex(x, y)

    # One-time parameter packing (pre-transpose/stack/pad) — not per call.
    w_stack, b_stack, geom = prepare_complex_linear_params(Wr, Wi, br, bi)

    out = jax.block_until_ready(complex_linear_apply(z, w_stack, b_stack, geom))

    real_ref = Wr @ x - Wi @ y + br
    imag_ref = Wr @ y + Wi @ x + bi

    assert out.shape == (out_features,) and out.dtype == jnp.complex64
    assert jnp.allclose(jnp.real(out), real_ref, atol=1e-4, rtol=1e-4)
    assert jnp.allclose(jnp.imag(out), imag_ref, atol=1e-4, rtol=1e-4)

    # --- Case 2: exercises multi-tile streaming + K accumulation + padding --
    in2, out2 = 200, 300
    ks = jax.random.split(jax.random.PRNGKey(1), 6)
    Wr2 = jax.random.normal(ks[0], (out2, in2), dtype=jnp.float32)
    Wi2 = jax.random.normal(ks[1], (out2, in2), dtype=jnp.float32)
    br2 = jax.random.normal(ks[2], (out2,), dtype=jnp.float32)
    bi2 = jax.random.normal(ks[3], (out2,), dtype=jnp.float32)
    x2 = jax.random.normal(ks[4], (in2,), dtype=jnp.float32)
    y2 = jax.random.normal(ks[5], (in2,), dtype=jnp.float32)
    z2 = jax.lax.complex(x2, y2)

    w2, b2, geom2 = prepare_complex_linear_params(Wr2, Wi2, br2, bi2, tn=128, tk=128)
    out2_ = jax.block_until_ready(complex_linear_apply(z2, w2, b2, geom2))

    real_ref2 = Wr2 @ x2 - Wi2 @ y2 + br2
    imag_ref2 = Wr2 @ y2 + Wi2 @ x2 + bi2
    assert out2_.shape == (out2,) and out2_.dtype == jnp.complex64
    assert jnp.allclose(jnp.real(out2_), real_ref2, atol=1e-3, rtol=1e-3)
    assert jnp.allclose(jnp.imag(out2_), imag_ref2, atol=1e-3, rtol=1e-3)

    print("KERNEL_OK")
</pallas_src>

<mosaic_0001>
module attributes {stable_mosaic.version = 11 : i64} {
  func.func @_complex_linear_kernel(%arg0: i32, %arg1: i32, %arg2: memref<2x128xf32, #tpu.memory_space<vmem>>, %arg3: memref<128x128xf32, #tpu.memory_space<vmem>>, %arg4: memref<2x128xf32, #tpu.memory_space<vmem>>, %arg5: memref<2x128xf32, #tpu.memory_space<vmem>>) attributes {dimension_semantics = [#tpu.dimension_semantics<parallel>, #tpu.dimension_semantics<arbitrary>], iteration_bounds = array<i64: 1, 1>, scalar_prefetch = 0 : i64, scratch_operands = 0 : i64, tpu.core_type = #tpu.core_type<tc>, window_params = [{transform_indices = @transform_0, window_bounds = array<i64: 2, 128>}, {transform_indices = @transform_1, window_bounds = array<i64: 128, 128>}, {transform_indices = @transform_2, window_bounds = array<i64: 2, 128>}, {transform_indices = @transform_3, window_bounds = array<i64: 2, 128>}]} {
    %c0_i32 = arith.constant 0 : i32
    %0 = arith.cmpi eq, %arg1, %c0_i32 : i32
    %1 = arith.extui %0 : i1 to i32
    %c0_i32_0 = arith.constant 0 : i32
    %2 = arith.cmpi ne, %1, %c0_i32_0 : i32
    scf.if %2 {
      %cst_10 = arith.constant 0.000000e+00 : f32
      %12 = vector.broadcast %cst_10 : f32 to vector<2x128xf32>
      %c0_11 = arith.constant 0 : index
      %c0_12 = arith.constant 0 : index
      %13 = vector.load %arg5[%c0_11, %c0_12] : memref<2x128xf32, #tpu.memory_space<vmem>>, vector<2x128xf32>
      tpu.vector_store %arg5[%c0_11, %c0_12], %12 {strides = array<i32>} : memref<2x128xf32, #tpu.memory_space<vmem>>, vector<2x128xf32>,
    } else {
    }
    %c0 = arith.constant 0 : index
    %c0_1 = arith.constant 0 : index
    %3 = vector.load %arg5[%c0, %c0_1] : memref<2x128xf32, #tpu.memory_space<vmem>>, vector<2x128xf32>
    %c0_2 = arith.constant 0 : index
    %c0_3 = arith.constant 0 : index
    %4 = vector.load %arg2[%c0_2, %c0_3] : memref<2x128xf32, #tpu.memory_space<vmem>>, vector<2x128xf32>
    %c0_4 = arith.constant 0 : index
    %c0_5 = arith.constant 0 : index
    %5 = vector.load %arg3[%c0_4, %c0_5] : memref<128x128xf32, #tpu.memory_space<vmem>>, vector<128x128xf32>
    %cst = arith.constant dense<0.000000e+00> : vector<2x128xf32>
    %6 = tpu.matmul %4, %5, %cst {dimension_numbers = #tpu.dot_dimension_numbers<[1], [0], [0], [1], [0, 0, 1, 1], [], []>} : vector<2x128xf32>, vector<128x128xf32>, vector<2x128xf32> -> vector<2x128xf32>
    %7 = arith.addf %3, %6 : vector<2x128xf32>
    %c0_6 = arith.constant 0 : index
    %c0_7 = arith.constant 0 : index
    %8 = vector.load %arg5[%c0_6, %c0_7] : memref<2x128xf32, #tpu.memory_space<vmem>>, vector<2x128xf32>
    tpu.vector_store %arg5[%c0_6, %c0_7], %7 {strides = array<i32>} : memref<2x128xf32, #tpu.memory_space<vmem>>, vector<2x128xf32>,
    %c0_i32_8 = arith.constant 0 : i32
    %9 = arith.cmpi eq, %arg1, %c0_i32_8 : i32
    %10 = arith.extui %9 : i1 to i32
    %c0_i32_9 = arith.constant 0 : i32
    %11 = arith.cmpi ne, %10, %c0_i32_9 : i32
    scf.if %11 {
      %c0_10 = arith.constant 0 : index
      %c0_11 = arith.constant 0 : index
      %12 = vector.load %arg5[%c0_10, %c0_11] : memref<2x128xf32, #tpu.memory_space<vmem>>, vector<2x128xf32>
      %c0_12 = arith.constant 0 : index
      %c0_13 = arith.constant 0 : index
      %13 = vector.load %arg4[%c0_12, %c0_13] : memref<2x128xf32, #tpu.memory_space<vmem>>, vector<2x128xf32>
      %14 = arith.addf %12, %13 : vector<2x128xf32>
      %c0_14 = arith.constant 0 : index
      %c0_15 = arith.constant 0 : index
      %15 = vector.load %arg5[%c0_14, %c0_15] : memref<2x128xf32, #tpu.memory_space<vmem>>, vector<2x128xf32>
      tpu.vector_store %arg5[%c0_14, %c0_15], %14 {strides = array<i32>} : memref<2x128xf32, #tpu.memory_space<vmem>>, vector<2x128xf32>,
    } else {
    }
    return
  }
  func.func @transform_0(%arg0: i32, %arg1: i32) -> (i32, i32) {
    %c0_i32 = arith.constant 0 : i32
    %c0_i32_0 = arith.constant 0 : i32
    return %c0_i32, %arg1 : i32, i32
  }
  func.func @transform_1(%arg0: i32, %arg1: i32) -> (i32, i32) {
    %c0_i32 = arith.constant 0 : i32
    return %arg1, %arg0 : i32, i32
  }
  func.func @transform_2(%arg0: i32, %arg1: i32) -> (i32, i32) {
    %c0_i32 = arith.constant 0 : i32
    %c0_i32_0 = arith.constant 0 : i32
    return %c0_i32, %arg0 : i32, i32
  }
  func.func @transform_3(%arg0: i32, %arg1: i32) -> (i32, i32) {
    %c0_i32 = arith.constant 0 : i32
    %c0_i32_0 = arith.constant 0 : i32
    return %c0_i32, %arg0 : i32, i32
  }
}

</mosaic_0001>

<llo_original>
// kernel: tpu_custom_call.1
$region0: #{tpu_custom_call.1}
  #allocation0 [shape = 'u32[]', space=smem, size = 0x4, offset = 0x4, fixed_abs, tag = 'smem constant byte address 0x4 - core index']
  #allocation1 [shape = 'u32[144,128]{1,0:T(1,128)}', space=vmem, size = 0x12000, scoped, tag = 'internal scratch']
  %s0 = inlined_call_operand.hbm [shape: f32[2,128], index: 0, kind: input, shape index: {}]
  %s1 = inlined_call_operand.hbm [shape: f32[128,128], index: 1, kind: input, shape index: {}]
  %s2 = inlined_call_operand.vmem [shape: f32[2,128], index: 2, kind: input, shape index: {}]
  %s3 = inlined_call_operand.hbm [shape: f32[2,128], index: 3, kind: output, shape index: {}]
  %s4 = sld [smem:[#allocation0]]
  $region38: #{tpu_custom_call.1} parent=0
    _
  %s6 = ssub.s32 1, %s4
  %s7 = scalar_select 0, %s6, %s4
  $region1: #{tpu_custom_call.1} parent=0
    #allocation2 [shape = 'u8[1024]{0}', space=vmem, size = 0x400, scoped, tag = 'input window, operand 0, single buffered']
    #allocation3 [shape = 's32[1]{0}', space=sflag, size = 0x4, scoped, tag = 'scoped memory for tpu_custom_call.1']
    #allocation4 [shape = 's32[1]{0}', space=sflag, size = 0x4, scoped, tag = 'scoped memory for tpu_custom_call.1']
    #allocation5 [shape = 'u8[65536]{0}', space=vmem, size = 0x10000, scoped, tag = 'input window, operand 1, single buffered']
    #allocation6 [shape = 's32[1]{0}', space=sflag, size = 0x4, scoped, tag = 'scoped memory for tpu_custom_call.1']
    #allocation7 [shape = 'u8[1024]{0}', space=vmem, size = 0x400, scoped, tag = 'output window, operand 0, single buffered']
    %8 = vsyncpa [#allocation3], 0
    %9 = vsyncpa [#allocation6], 0
    %10 = vsyncpa [#allocation4], 0
    // Predicated region
    $region2: #{tpu_custom_call.1} parent=1 // pred_check
      _
    $region3: #{tpu_custom_call.1} parent=1 // pred_check_branch
      %12 = sbr.rel (0) target = $region5
    $region4: #{tpu_custom_call.1} parent=1 // pred_region
      %s14 = ssub.s32 32, 32
      %15 = vsyncadd [#allocation3], %s14
      %s17 = sshll.u32 [#allocation2], 4
      %s18 = int_to_ptr.vmem [resolvable:$true] %s17
      %20 = dma.hbm_to_vmem [thread:$0]  %s0, 32, %s18, [#allocation3]
    $region5: #{tpu_custom_call.1} parent=1 // pred_fallthru
      _
    // Predicated region
    $region6: #{tpu_custom_call.1} parent=1 // pred_check
      _
    $region7: #{tpu_custom_call.1} parent=1 // pred_check_branch
      %22 = sbr.rel (0) target = $region9
    $region8: #{tpu_custom_call.1} parent=1 // pred_region
      %s24 = ssub.s32 2048, 2048
      %25 = vsyncadd [#allocation6], %s24
      %s26 = sshll.u32 [#allocation5], 4
      %s27 = int_to_ptr.vmem [resolvable:$true] %s26
      %32 = dma.hbm_to_vmem [thread:$0]  %s1, 2048, %s27, [#allocation6], 128, 128, 8
    $region9: #{tpu_custom_call.1} parent=1 // pred_fallthru
      _
    // Predicated region
    $region10: #{tpu_custom_call.1} parent=1 // pred_check
      _
    $region11: #{tpu_custom_call.1} parent=1 // pred_check_branch
      %34 = sbr.rel (0) target = $region13
    $region12: #{tpu_custom_call.1} parent=1 // pred_region
      _
    $region13: #{tpu_custom_call.1} parent=1 // pred_fallthru
      _
    // Predicated region
    $region14: #{tpu_custom_call.1} parent=1 // pred_check
      _
    $region15: #{tpu_custom_call.1} parent=1 // pred_check_branch
      %36 = sbr.rel (0) target = $region17
    $region16: #{tpu_custom_call.1} parent=1 // pred_region
      %37 = dma.done [#allocation3], 32
    $region17: #{tpu_custom_call.1} parent=1 // pred_fallthru
      _
    // Predicated region
    $region18: #{tpu_custom_call.1} parent=1 // pred_check
      _
    $region19: #{tpu_custom_call.1} parent=1 // pred_check_branch
      %39 = sbr.rel (0) target = $region21
    $region20: #{tpu_custom_call.1} parent=1 // pred_region
      %40 = dma.done [#allocation6], 2048
    $region21: #{tpu_custom_call.1} parent=1 // pred_fallthru
      _
    %p41 = scmp.eq.s32.totalorder 0, 0
    // Predicated region
    $region22: #{tpu_custom_call.1} parent=1 // pred_check
      %p42 = pneg %p41
    $region23: #{tpu_custom_call.1} parent=1 // pred_check_branch
      %44 = sbr.rel (%p42) target = $region25
    $region24: #{tpu_custom_call.1} parent=1 // pred_region
      %45 = vst [vmem:[#allocation7] sm:$0x3] 0.0
    $region25: #{tpu_custom_call.1} parent=1 // pred_fallthru
      _
    %v46 = vld [vmem:[#allocation7] sm:$0x3]
    %v47 = vld [vmem:[#allocation2] sm:$0x3]
    %v48 = vld [vmem:[#allocation5] sm:$0xff]
    %v49 = vld [vmem:[#allocation5 + $0x8] sm:$0xff]
    %v50 = vld [vmem:[#allocation5 + $0x10] sm:$0xff]
    %v51 = vld [vmem:[#allocation5 + $0x18] sm:$0xff]
    %v52 = vld [vmem:[#allocation5 + $0x20] sm:$0xff]
    %v53 = vld [vmem:[#allocation5 + $0x28] sm:$0xff]
    %v54 = vld [vmem:[#allocation5 + $0x30] sm:$0xff]
    %v55 = vld [vmem:[#allocation5 + $0x38] sm:$0xff]
    %v56 = vld [vmem:[#allocation5 + $0x40] sm:$0xff]
    %v57 = vld [vmem:[#allocation5 + $0x48] sm:$0xff]
    %v58 = vld [vmem:[#allocation5 + $0x50] sm:$0xff]
    %v59 = vld [vmem:[#allocation5 + $0x58] sm:$0xff]
    %v60 = vld [vmem:[#allocation5 + $0x60] sm:$0xff]
    %v61 = vld [vmem:[#allocation5 + $0x68] sm:$0xff]
    %v62 = vld [vmem:[#allocation5 + $0x70] sm:$0xff]
    %v63 = vld [vmem:[#allocation5 + $0x78] sm:$0xff]
    %64 = vmatprep.subr.mxu0 0.0
    %65 = vmatpush1.msra.mxu0 %v48
    %66 = vmatprep.subr.mxu0 0.0
    %67 = vmatpush1.msra.mxu0 %v49
    %68 = vmatprep.subr.mxu0 0.0
    %69 = vmatpush1.msra.mxu0 %v50
    %70 = vmatprep.subr.mxu0 0.0
    %71 = vmatpush1.msra.mxu0 %v51
    %72 = vmatprep.subr.mxu0 0.0
    %73 = vmatpush1.msra.mxu0 %v52
    %74 = vmatprep.subr.mxu0 0.0
    %75 = vmatpush1.msra.mxu0 %v53
    %76 = vmatprep.subr.mxu0 0.0
    %77 = vmatpush1.msra.mxu0 %v54
    %78 = vmatprep.subr.mxu0 0.0
    %79 = vmatpush1.msra.mxu0 %v55
    %80 = vmatprep.subr.mxu0 0.0
    %81 = vmatpush1.msra.mxu0 %v56
    %82 = vmatprep.subr.mxu0 0.0
    %83 = vmatpush1.msra.mxu0 %v57
    %84 = vmatprep.subr.mxu0 0.0
    %85 = vmatpush1.msra.mxu0 %v58
    %86 = vmatprep.subr.mxu0 0.0
    %87 = vmatpush1.msra.mxu0 %v59
    %88 = vmatprep.subr.mxu0 0.0
    %89 = vmatpush1.msra.mxu0 %v60
    %90 = vmatprep.subr.mxu0 0.0
    %91 = vmatpush1.msra.mxu0 %v61
    %92 = vmatprep.subr.mxu0 0.0
    %93 = vmatpush1.msra.mxu0 %v62
    %94 = vmatprep.subr.mxu0 0.0
    %95 = vmatpush1.msra.mxu0 %v63
    %96 = vmatprep.subr.mxu0 0.0
    %97 = vmatpush1.msra.mxu0 0.0
    %98 = vmatprep.subr.mxu0 0.0
    %99 = vmatpush1.msra.mxu0 0.0
    %100 = vmatprep.subr.mxu0 0.0
    %101 = vmatpush1.msra.mxu0 0.0
    %102 = vmatprep.subr.mxu0 0.0
    %103 = vmatpush1.msra.mxu0 0.0
    %104 = vmatprep.subr.mxu0 0.0
    %105 = vmatpush1.msra.mxu0 0.0
    %106 = vmatprep.subr.mxu0 0.0
    %107 = vmatpush1.msra.mxu0 0.0
    %108 = vmatprep.subr.mxu0 0.0
    %109 = vmatpush1.msra.mxu0 0.0
    %110 = vmatprep.subr.mxu0 0.0
    %111 = vmatpush1.msra.mxu0 0.0
    %112 = vmatprep.subr.mxu0 0.0
    %113 = vmatpush1.msra.mxu0 0.0
    %114 = vmatprep.subr.mxu0 0.0
    %115 = vmatpush1.msra.mxu0 0.0
    %116 = vmatprep.subr.mxu0 0.0
    %117 = vmatpush1.msra.mxu0 0.0
    %118 = vmatprep.subr.mxu0 0.0
    %119 = vmatpush1.msra.mxu0 0.0
    %120 = vmatprep.subr.mxu0 0.0
    %121 = vmatpush1.msra.mxu0 0.0
    %122 = vmatprep.subr.mxu0 0.0
    %123 = vmatpush1.msra.mxu0 0.0
    %124 = vmatprep.subr.mxu0 0.0
    %125 = vmatpush1.msra.mxu0 0.0
    %126 = vmatprep.subr.mxu0 0.0
    %127 = vmatpush1.msra.mxu0 0.0
    %128 = vmatprep.mubr.f32.mxu0 0.0
    %129 = vmatmul.mubr.f32.gmra.mrb[0].mxu0 %v47
    %v130 = vpop.f32.mrb[0].mxu0
    %v131 = vadd.f32 0.0, %v130
    %v132 = vpop.f32.mrb[0].mxu0
    %133 = vdwg.mxu0
    %v134 = vadd.f32 %v46, %v131
    %135 = vst [vmem:[#allocation7] sm:$0x3] %v134
    // Predicated region
    $region26: #{tpu_custom_call.1} parent=1 // pred_check
      %p136 = pneg %p41
    $region27: #{tpu_custom_call.1} parent=1 // pred_check_branch
      %138 = sbr.rel (%p136) target = $region29
    $region28: #{tpu_custom_call.1} parent=1 // pred_region
      %v139 = vld [vmem:[#allocation7] sm:$0x3]
      %v140 = vld [vmem:[%s2] sm:$0x3]
      %v141 = vadd.f32 %v139, %v140
      %142 = vst [vmem:[#allocation7] sm:$0x3] %v141
    $region29: #{tpu_custom_call.1} parent=1 // pred_fallthru
      _
    // Predicated region
    $region30: #{tpu_custom_call.1} parent=1 // pred_check
      _
    $region31: #{tpu_custom_call.1} parent=1 // pred_check_branch
      %144 = sbr.rel (0) target = $region33
    $region32: #{tpu_custom_call.1} parent=1 // pred_region
      %s146 = ssub.s32 32, 32
      %147 = vsyncadd [#allocation4], %s146
      %s149 = sshll.u32 [#allocation7], 4
      %s150 = int_to_ptr.vmem [resolvable:$true] %s149
      %152 = dma.vmem_to_hbm [thread:$0]  %s150, 32, %s3, [#allocation4]
    $region33: #{tpu_custom_call.1} parent=1 // pred_fallthru
      _
    // Predicated region
    $region34: #{tpu_custom_call.1} parent=1 // pred_check
      _
    $region35: #{tpu_custom_call.1} parent=1 // pred_check_branch
      %154 = sbr.rel (0) target = $region37
    $region36: #{tpu_custom_call.1} parent=1 // pred_region
      %155 = dma.done [#allocation4], 32
    $region37: #{tpu_custom_call.1} parent=1 // pred_fallthru
      _
    %156 = vsyncpa [#allocation3], 1
    %157 = vsyncpa [#allocation6], 1
    %158 = vsyncpa [#allocation4], 1

</llo_original>
